<compile_context>
chip_gen: v6e
topology: v6e:2x2x1
jax: 0.10.0
libtpu: 0.0.40
codegen_flags: <defaults>
</compile_context>

<pallas_src>
import functools

import jax
import jax.numpy as jnp
from jax.experimental import pallas as pl
from jax.experimental.pallas import tpu as pltpu

EMBED_DIM = 32

# Tile preferences: 256-aligned (v6e/v7x 2x256 MXU), still 128-aligned for v5e.
TM, TN, TK = 256, 256, 256
VMEM_LIMIT = 32 * 1024 * 1024  # safe on v5e/v6e (128 MiB) and v7x (64 MiB)


def _round_up(x, m):
    return (x + m - 1) // m * m


def _pick_tiles(M, K, N):
    """Choose (tm, tn, tk) and padded (Mp, Np, Kp) respecting TPU (8,128) rules."""
    tm = min(TM, _round_up(M, 8))
    Mp = _round_up(M, tm)
    if N <= TN:
        tn, Np = N, N                      # full-dim lane block (allowed even if <128)
    else:
        tn = TN
        Np = _round_up(N, tn)
    if K <= TK and K % 8 == 0:
        tk, Kp = K, K                      # full-dim K block, no padding
    else:
        best = None
        for cand in (256, 128):            # minimize K padding, prefer bigger tile
            kp_c = _round_up(K, cand)
            key = (kp_c, -cand)
            if best is None or key < best[0]:
                best = (key, cand, kp_c)
        tk, Kp = best[1], best[2]
    return tm, tn, tk, Mp, Np, Kp


# --------------------- fused conv-as-matmul Pallas kernel ---------------------

def _matmul_affine_kernel(a_ref, b_ref, scale_ref, shift_ref, *refs, relu, has_res):
    # out = relu?( (A @ B) * scale + shift [+ residual] )   — BN folded, residual fused
    if has_res:
        res_ref, o_ref, acc_ref = refs
    else:
        o_ref, acc_ref = refs
        res_ref = None

    @pl.when(pl.program_id(2) == 0)
    def _init():
        acc_ref[...] = jnp.zeros_like(acc_ref)

    acc_ref[...] += jnp.dot(a_ref[...], b_ref[...],
                            preferred_element_type=jnp.float32)

    @pl.when(pl.program_id(2) == pl.num_programs(2) - 1)
    def _finish():
        y = acc_ref[...] * scale_ref[...] + shift_ref[...]
        if has_res:
            y = y + res_ref[...]
        if relu:
            y = jnp.maximum(y, 0.0)
        o_ref[...] = y


def matmul_affine(a, b, scale, shift, *, relu, residual=None):
    # a: (M, K) f32, b: (K, O) bf16, scale/shift: (1, O) f32,
    # residual: optional (M, O) f32  ->  (M, O) f32
    M, K = a.shape
    _, N = b.shape
    tm, tn, tk, Mp, Np, Kp = _pick_tiles(M, K, N)

    a_p = a.astype(jnp.bfloat16)
    if (Mp, Kp) != (M, K):
        a_p = jnp.pad(a_p, ((0, Mp - M), (0, Kp - K)))
    b_p = b.astype(jnp.bfloat16)
    if (Kp, Np) != (K, N):
        b_p = jnp.pad(b_p, ((0, Kp - K), (0, Np - N)))
    scale_p = scale if Np == N else jnp.pad(scale, ((0, 0), (0, Np - N)))
    shift_p = shift if Np == N else jnp.pad(shift, ((0, 0), (0, Np - N)))

    has_res = residual is not None
    inputs = [a_p, b_p, scale_p, shift_p]
    in_specs = [
        pl.BlockSpec((tm, tk), lambda i, j, k: (i, k)),
        pl.BlockSpec((tk, tn), lambda i, j, k: (k, j)),
        pl.BlockSpec((1, tn), lambda i, j, k: (0, j)),
        pl.BlockSpec((1, tn), lambda i, j, k: (0, j)),
    ]
    if has_res:
        r_p = residual.astype(jnp.float32)
        if (Mp, Np) != (M, N):
            r_p = jnp.pad(r_p, ((0, Mp - M), (0, Np - N)))
        inputs.append(r_p)
        in_specs.append(pl.BlockSpec((tm, tn), lambda i, j, k: (i, j)))

    grid = (Mp // tm, Np // tn, Kp // tk)
    flops = 2 * Mp * Np * Kp
    bytes_accessed = (Mp * Kp + Kp * Np) * 2 + Mp * Np * 4 + 2 * Np * 4
    if has_res:
        bytes_accessed += Mp * Np * 4

    out = pl.pallas_call(
        functools.partial(_matmul_affine_kernel, relu=relu, has_res=has_res),
        out_shape=jax.ShapeDtypeStruct((Mp, Np), jnp.float32),
        grid_spec=pltpu.PrefetchScalarGridSpec(
            num_scalar_prefetch=0,
            grid=grid,
            in_specs=in_specs,
            out_specs=pl.BlockSpec((tm, tn), lambda i, j, k: (i, j)),
            scratch_shapes=[pltpu.VMEM((tm, tn), jnp.float32)],
        ),
        compiler_params=pltpu.CompilerParams(
            dimension_semantics=("parallel", "parallel", "arbitrary"),
            vmem_limit_bytes=VMEM_LIMIT,
        ),
        cost_estimate=pl.CostEstimate(flops=flops, transcendentals=0,
                                      bytes_accessed=bytes_accessed),
    )(*inputs)

    if (Mp, Np) != (M, N):
        out = out[:M, :N]
    return out


# ------------------------------ maxpool kernel --------------------------------

def _maxpool_kernel(ee_ref, eo_ref, oe_ref, oo_ref, o_ref, *, Ho, Wo):
    # 3x3 stride-2 pad-1 max-pool via even/odd parity windows (contiguous loads only)
    m = oo_ref[:, :Ho, :Wo, :]
    for dh in (0, 1):
        m = jnp.maximum(m, eo_ref[:, dh:dh + Ho, :Wo, :])
        for dw in (0, 1):
            m = jnp.maximum(m, ee_ref[:, dh:dh + Ho, dw:dw + Wo, :])
    for dw in (0, 1):
        m = jnp.maximum(m, oe_ref[:, :Ho, dw:dw + Wo, :])
    o_ref[...] = m


def maxpool_3x3_s2(x):
    # MaxPool2d(kernel_size=3, stride=2, padding=1) on NHWC
    N, H, W, C = x.shape
    Ho = (H - 1) // 2 + 1
    Wo = (W - 1) // 2 + 1
    xp = jnp.pad(x, ((0, 0), (1, 1), (1, 1), (0, 0)), constant_values=-jnp.inf)
    parts = []
    for rh in (0, 1):
        for rw in (0, 1):
            t = xp[:, rh::2, rw::2, :]
            ph = (Ho + 1) - t.shape[1]
            pw = (Wo + 1) - t.shape[2]
            if ph > 0 or pw > 0:
                t = jnp.pad(t, ((0, 0), (0, max(ph, 0)), (0, max(pw, 0)), (0, 0)),
                            constant_values=-jnp.inf)
            parts.append(t)
    ee, eo, oe, oo = parts
    He, We = Ho + 1, Wo + 1

    return pl.pallas_call(
        functools.partial(_maxpool_kernel, Ho=Ho, Wo=Wo),
        out_shape=jax.ShapeDtypeStruct((N, Ho, Wo, C), jnp.float32),
        grid_spec=pltpu.PrefetchScalarGridSpec(
            num_scalar_prefetch=0,
            grid=(N,),
            in_specs=[pl.BlockSpec((1, He, We, C), lambda n: (n, 0, 0, 0))] * 4,
            out_specs=pl.BlockSpec((1, Ho, Wo, C), lambda n: (n, 0, 0, 0)),
        ),
        compiler_params=pltpu.CompilerParams(
            dimension_semantics=("parallel",),
            vmem_limit_bytes=VMEM_LIMIT,
        ),
    )(ee, eo, oe, oo)


# -------------------------------- head kernel ----------------------------------

def _head_kernel(f_ref, w_ref, b_ref, o_ref):
    # AdaptiveAvgPool2d((1,1)) + Flatten + Linear(2048, E_pad) + ReLU
    pooled = jnp.mean(f_ref[...], axis=1)                       # (N, 2048) f32
    y = jnp.dot(pooled.astype(jnp.bfloat16), w_ref[...],
                preferred_element_type=jnp.float32)
    o_ref[...] = jnp.maximum(y + b_ref[...], 0.0)


def head(features, w_pad, b_pad, embed_dim):
    # features: (N, P, 2048); w_pad: (2048, 128) bf16; b_pad: (1, 128) f32
    N = features.shape[0]
    out = pl.pallas_call(
        _head_kernel,
        out_shape=jax.ShapeDtypeStruct((N, w_pad.shape[1]), jnp.float32),
    )(features, w_pad, b_pad)
    return out[:, :embed_dim]
    # TODO(synk): nn.Dropout(0.2) is identity (eval-mode semantics); training-mode
    # stochastic dropout would use pltpu.prng_seed/prng_random_bits in _head_kernel.


# -------------------------------- JAX glue --------------------------------------

def im2col(x, kh, kw, stride, pad):
    # x: (N, H, W, C) NHWC -> (N*Ho*Wo, kh*kw*C), K order = (i, j, c)
    # TODO(synk): 3x3/7x7 convs still materialize im2col in HBM; a sum-of-taps
    # K-grid with BlockSpec-indexed shifted windows would avoid the 9x/49x blowup.
    N, H, W, C = x.shape
    Ho = (H + 2 * pad - kh) // stride + 1
    Wo = (W + 2 * pad - kw) // stride + 1
    xp = jnp.pad(x, ((0, 0), (pad, pad), (pad, pad), (0, 0)))
    cols = []
    for i in range(kh):
        for j in range(kw):
            cols.append(xp[:, i:i + stride * Ho:stride, j:j + stride * Wo:stride, :])
    col = jnp.concatenate(cols, axis=-1)
    return col.reshape(N * Ho * Wo, kh * kw * C), (N, Ho, Wo)


def conv1x1_bn(x, cp, stride, relu, residual=None):
    w_mat, scale, shift = cp
    if stride > 1:
        x = x[:, ::stride, ::stride, :]
    N, H, W, C = x.shape
    out = matmul_affine(x.reshape(N * H * W, C), w_mat, scale, shift,
                        relu=relu, residual=residual)
    return out.reshape(N, H, W, w_mat.shape[1])


def conv_im2col_bn(x, cp, kh, kw, stride, pad, relu):
    w_mat, scale, shift = cp
    col, (N, Ho, Wo) = im2col(x, kh, kw, stride, pad)
    out = matmul_affine(col, w_mat, scale, shift, relu=relu)
    return out.reshape(N, Ho, Wo, w_mat.shape[1])


def bottleneck(x, p):
    # torchvision Bottleneck: 1x1 -> 3x3(stride) -> 1x1(*4), residual, ReLU
    stride = p['stride']
    out = conv1x1_bn(x, p['c1'], stride=1, relu=True)
    out = conv_im2col_bn(out, p['c2'], 3, 3, stride=stride, pad=1, relu=True)
    if 'cd' in p:
        identity = conv1x1_bn(x, p['cd'], stride=stride, relu=False)
    else:
        identity = x
    N, H, W, C = identity.shape
    residual = identity.reshape(N * H * W, C)
    # residual add + final ReLU fused into the 3rd conv's matmul epilogue
    return conv1x1_bn(out, p['c3'], stride=1, relu=True, residual=residual)


def image_encoder_forward(params, images_nchw):
    x = jnp.transpose(images_nchw, (0, 2, 3, 1)).astype(jnp.float32)   # -> NHWC
    x = conv_im2col_bn(x, params['conv1'], 7, 7, stride=2, pad=3, relu=True)
    x = maxpool_3x3_s2(x)
    for blocks in params['layers']:                                    # layer1..layer4
        for p in blocks:
            x = bottleneck(x, p)
    N, H, W, C = x.shape
    return head(x.reshape(N, H * W, C), params['fc_w'], params['fc_b'], EMBED_DIM)


# --------------------------- deterministic params --------------------------------

def _conv_matmul_params(key, o, i, kh, kw):
    kconv, kscale, kshift = jax.random.split(key, 3)
    fan_in = i * kh * kw
    w = jax.random.normal(kconv, (o, i, kh, kw), jnp.float32) * jnp.sqrt(2.0 / fan_in)
    # pre-pack to (kh*kw*I, O) matmul layout once, bf16 for the MXU
    w_mat = jnp.transpose(w, (2, 3, 1, 0)).reshape(kh * kw * i, o).astype(jnp.bfloat16)
    scale = 1.0 + 0.1 * jax.random.normal(kscale, (1, o), jnp.float32)   # folded BN
    shift = 0.1 * jax.random.normal(kshift, (1, o), jnp.float32)
    return w_mat, scale, shift


def init_params(key, embedding_dim):
    keys = iter(jax.random.split(key, 256))
    params = {'conv1': _conv_matmul_params(next(keys), 64, 3, 7, 7)}
    # (num_blocks, width, c_in, c_out, stride) for layer1..layer4 of ResNet50
    cfg = [(3, 64, 64, 256, 1), (4, 128, 256, 512, 2),
           (6, 256, 512, 1024, 2), (3, 512, 1024, 2048, 2)]
    layers = []
    for blocks, width, c_in, c_out, stride in cfg:
        blk_list = []
        for b in range(blocks):
            cin = c_in if b == 0 else c_out
            s = stride if b == 0 else 1
            p = {'stride': s}
            p['c1'] = _conv_matmul_params(next(keys), width, cin, 1, 1)
            p['c2'] = _conv_matmul_params(next(keys), width, width, 3, 3)
            p['c3'] = _conv_matmul_params(next(keys), c_out, width, 1, 1)
            if b == 0:
                p['cd'] = _conv_matmul_params(next(keys), c_out, cin, 1, 1)
            blk_list.append(p)
        layers.append(blk_list)
    params['layers'] = layers

    kfc_w, kfc_b = jax.random.split(next(keys), 2)
    fc_w = jax.random.normal(kfc_w, (2048, embedding_dim), jnp.float32) * jnp.sqrt(1.0 / 2048)
    fc_b = 0.01 * jax.random.normal(kfc_b, (1, embedding_dim), jnp.float32)
    e_pad = _round_up(embedding_dim, 128) - embedding_dim          # lane-dense head output
    params['fc_w'] = jnp.pad(fc_w, ((0, 0), (0, e_pad))).astype(jnp.bfloat16)
    params['fc_b'] = jnp.pad(fc_b, ((0, 0), (0, e_pad)))
    return params


if __name__ == "__main__":
    key = jax.random.PRNGKey(0)
    k_img, k_par = jax.random.split(key)
    # small, NCHW like PyTorch: batch=2, channels=3 (RGB), spatial=16
    images = jax.random.normal(k_img, (2, 3, 16, 16), jnp.float32)
    params = init_params(k_par, EMBED_DIM)

    emb = image_encoder_forward(params, images)
    emb = jax.block_until_ready(emb)

    assert emb.shape == (2, EMBED_DIM), emb.shape
    assert bool(jnp.all(jnp.isfinite(emb))), "non-finite output"
    assert bool(jnp.all(emb >= 0.0)), "ReLU epilogue violated"
    print("KERNEL_OK")
</pallas_src>

<mosaic_0001>
module attributes {stable_mosaic.version = 11 : i64} {
  func.func @_matmul_affine_kernel(%arg0: i32, %arg1: i32, %arg2: i32, %arg3: memref<128x256xbf16, #tpu.memory_space<vmem>>, %arg4: memref<256x64xbf16, #tpu.memory_space<vmem>>, %arg5: memref<1x64xf32, #tpu.memory_space<vmem>>, %arg6: memref<1x64xf32, #tpu.memory_space<vmem>>, %arg7: memref<128x64xf32, #tpu.memory_space<vmem>>, %arg8: memref<128x64xf32, #tpu.memory_space<vmem>>) attributes {dimension_semantics = [#tpu.dimension_semantics<parallel>, #tpu.dimension_semantics<parallel>, #tpu.dimension_semantics<arbitrary>], iteration_bounds = array<i64: 1, 1, 1>, scalar_prefetch = 0 : i64, scratch_operands = 1 : i64, tpu.core_type = #tpu.core_type<tc>, window_params = [{transform_indices = @transform_0, window_bounds = array<i64: 128, 256>}, {transform_indices = @transform_1, window_bounds = array<i64: 256, 64>}, {transform_indices = @transform_2, window_bounds = array<i64: 1, 64>}, {transform_indices = @transform_3, window_bounds = array<i64: 1, 64>}, {transform_indices = @transform_4, window_bounds = array<i64: 128, 64>}]} {
    %c0_i32 = arith.constant 0 : i32
    %0 = arith.cmpi eq, %arg2, %c0_i32 : i32
    %1 = arith.extui %0 : i1 to i32
    %c0_i32_0 = arith.constant 0 : i32
    %2 = arith.cmpi ne, %1, %c0_i32_0 : i32
    scf.if %2 {
      %cst_10 = arith.constant 0.000000e+00 : f32
      %12 = vector.broadcast %cst_10 : f32 to vector<128x64xf32>
      %c0_11 = arith.constant 0 : index
      %c0_12 = arith.constant 0 : index
      %13 = vector.load %arg8[%c0_11, %c0_12] : memref<128x64xf32, #tpu.memory_space<vmem>>, vector<128x64xf32>
      tpu.vector_store %arg8[%c0_11, %c0_12], %12 {strides = array<i32>} : memref<128x64xf32, #tpu.memory_space<vmem>>, vector<128x64xf32>,
    } else {
    }
    %c0 = arith.constant 0 : index
    %c0_1 = arith.constant 0 : index
    %3 = vector.load %arg8[%c0, %c0_1] : memref<128x64xf32, #tpu.memory_space<vmem>>, vector<128x64xf32>
    %c0_2 = arith.constant 0 : index
    %c0_3 = arith.constant 0 : index
    %4 = vector.load %arg3[%c0_2, %c0_3] : memref<128x256xbf16, #tpu.memory_space<vmem>>, vector<128x256xbf16>
    %c0_4 = arith.constant 0 : index
    %c0_5 = arith.constant 0 : index
    %5 = vector.load %arg4[%c0_4, %c0_5] : memref<256x64xbf16, #tpu.memory_space<vmem>>, vector<256x64xbf16>
    %cst = arith.constant dense<0.000000e+00> : vector<128x64xf32>
    %6 = tpu.matmul %4, %5, %cst {dimension_numbers = #tpu.dot_dimension_numbers<[1], [0], [0], [1], [0, 0, 1, 1], [], []>} : vector<128x256xbf16>, vector<256x64xbf16>, vector<128x64xf32> -> vector<128x64xf32>
    %7 = arith.addf %3, %6 : vector<128x64xf32>
    %c0_6 = arith.constant 0 : index
    %c0_7 = arith.constant 0 : index
    %8 = vector.load %arg8[%c0_6, %c0_7] : memref<128x64xf32, #tpu.memory_space<vmem>>, vector<128x64xf32>
    tpu.vector_store %arg8[%c0_6, %c0_7], %7 {strides = array<i32>} : memref<128x64xf32, #tpu.memory_space<vmem>>, vector<128x64xf32>,
    %c0_i32_8 = arith.constant 0 : i32
    %9 = arith.cmpi eq, %arg2, %c0_i32_8 : i32
    %10 = arith.extui %9 : i1 to i32
    %c0_i32_9 = arith.constant 0 : i32
    %11 = arith.cmpi ne, %10, %c0_i32_9 : i32
    scf.if %11 {
      %c0_10 = arith.constant 0 : index
      %c0_11 = arith.constant 0 : index
      %12 = vector.load %arg8[%c0_10, %c0_11] : memref<128x64xf32, #tpu.memory_space<vmem>>, vector<128x64xf32>
      %c0_12 = arith.constant 0 : index
      %c0_13 = arith.constant 0 : index
      %13 = vector.load %arg5[%c0_12, %c0_13] : memref<1x64xf32, #tpu.memory_space<vmem>>, vector<1x64xf32>
      %14 = vector.broadcast %13 : vector<1x64xf32> to vector<128x64xf32>
      %15 = arith.mulf %12, %14 : vector<128x64xf32>
      %c0_14 = arith.constant 0 : index
      %c0_15 = arith.constant 0 : index
      %16 = vector.load %arg6[%c0_14, %c0_15] : memref<1x64xf32, #tpu.memory_space<vmem>>, vector<1x64xf32>
      %17 = vector.broadcast %16 : vector<1x64xf32> to vector<128x64xf32>
      %18 = arith.addf %15, %17 : vector<128x64xf32>
      %cst_16 = arith.constant 0.000000e+00 : f32
      %19 = vector.broadcast %cst_16 : f32 to vector<128x64xf32>
      %20 = arith.maximumf %18, %19 : vector<128x64xf32>
      %c0_17 = arith.constant 0 : index
      %c0_18 = arith.constant 0 : index
      %21 = vector.load %arg7[%c0_17, %c0_18] : memref<128x64xf32, #tpu.memory_space<vmem>>, vector<128x64xf32>
      tpu.vector_store %arg7[%c0_17, %c0_18], %20 {strides = array<i32>} : memref<128x64xf32, #tpu.memory_space<vmem>>, vector<128x64xf32>,
    } else {
    }
    return
  }
  func.func @transform_0(%arg0: i32, %arg1: i32, %arg2: i32) -> (i32, i32) {
    %c0_i32 = arith.constant 0 : i32
    return %arg0, %arg2 : i32, i32
  }
  func.func @transform_1(%arg0: i32, %arg1: i32, %arg2: i32) -> (i32, i32) {
    %c0_i32 = arith.constant 0 : i32
    return %arg2, %arg1 : i32, i32
  }
  func.func @transform_2(%arg0: i32, %arg1: i32, %arg2: i32) -> (i32, i32) {
    %c0_i32 = arith.constant 0 : i32
    %c0_i32_0 = arith.constant 0 : i32
    return %c0_i32, %arg1 : i32, i32
  }
  func.func @transform_3(%arg0: i32, %arg1: i32, %arg2: i32) -> (i32, i32) {
    %c0_i32 = arith.constant 0 : i32
    %c0_i32_0 = arith.constant 0 : i32
    return %c0_i32, %arg1 : i32, i32
  }
  func.func @transform_4(%arg0: i32, %arg1: i32, %arg2: i32) -> (i32, i32) {
    %c0_i32 = arith.constant 0 : i32
    return %arg0, %arg1 : i32, i32
  }
}

</mosaic_0001>

<llo_original>
// kernel: tpu_custom_call.1
$region0: #{tpu_custom_call.1}
  #allocation0 [shape = 'u32[]', space=smem, size = 0x4, offset = 0x4, fixed_abs, tag = 'smem constant byte address 0x4 - core index']
  #allocation1 [shape = 'u32[144,128]{1,0:T(1,128)}', space=vmem, size = 0x12000, scoped, tag = 'internal scratch']
  #allocation2 [shape = 'f32[128,64]{1,0:T(8,128)}', space=vmem, size = 0x10000, scoped, tag = 'scratch operand']
  %s0 = inlined_call_operand.vmem [shape: bf16[128,256], index: 0, kind: input, shape index: {}]
  %s1 = inlined_call_operand.vmem [shape: bf16[256,64], index: 1, kind: input, shape index: {}]
  %s2 = inlined_call_operand.vmem [shape: f32[1,64], index: 2, kind: input, shape index: {}]
  %s3 = inlined_call_operand.vmem [shape: f32[1,64], index: 3, kind: input, shape index: {}]
  %s4 = inlined_call_operand.vmem [shape: f32[128,64], index: 4, kind: output, shape index: {}]
  %s5 = sld [smem:[#allocation0]]
  $region34: #{tpu_custom_call.1} parent=0
    _
  %s7 = ssub.s32 1, %s5
  %s8 = scalar_select 0, %s7, %s5
  // Predicated region
  $region2: #{tpu_custom_call.1} parent=0 // pred_check
    _
  $region3: #{tpu_custom_call.1} parent=0 // pred_check_branch
    %10 = sbr.rel (0) target = $region5
  $region4: #{tpu_custom_call.1} parent=0 // pred_region
    _
  $region5: #{tpu_custom_call.1} parent=0 // pred_fallthru
    _
  // Predicated region
  $region6: #{tpu_custom_call.1} parent=0 // pred_check
    _
  $region7: #{tpu_custom_call.1} parent=0 // pred_check_branch
    %12 = sbr.rel (0) target = $region9
  $region8: #{tpu_custom_call.1} parent=0 // pred_region
    _
  $region9: #{tpu_custom_call.1} parent=0 // pred_fallthru
    _
  // Predicated region
  $region10: #{tpu_custom_call.1} parent=0 // pred_check
    _
  $region11: #{tpu_custom_call.1} parent=0 // pred_check_branch
    %14 = sbr.rel (0) target = $region13
  $region12: #{tpu_custom_call.1} parent=0 // pred_region
    _
  $region13: #{tpu_custom_call.1} parent=0 // pred_fallthru
    _
  // Predicated region
  $region14: #{tpu_custom_call.1} parent=0 // pred_check
    _
  $region15: #{tpu_custom_call.1} parent=0 // pred_check_branch
    %16 = sbr.rel (0) target = $region17
  $region16: #{tpu_custom_call.1} parent=0 // pred_region
    _
  $region17: #{tpu_custom_call.1} parent=0 // pred_fallthru
    _
  %p18 = scmp.eq.s32.totalorder 0, 0
  // Predicated region
  $region18: #{tpu_custom_call.1} parent=0 // pred_check
    %p19 = pneg %p18
  $region19: #{tpu_custom_call.1} parent=0 // pred_check_branch
    %21 = sbr.rel (%p19) target = $region21
  $region20: #{tpu_custom_call.1} parent=0 // pred_region
    %vm22 = vcmask 523264
    %23 = vst.msk [vmem:[#allocation2] sm:$0xff] %vm22, 0.0
    %24 = vst.msk [vmem:[#allocation2 + $0x8] sm:$0xff] %vm22, 0.0
    %25 = vst.msk [vmem:[#allocation2 + $0x10] sm:$0xff] %vm22, 0.0
    %26 = vst.msk [vmem:[#allocation2 + $0x18] sm:$0xff] %vm22, 0.0
    %27 = vst.msk [vmem:[#allocation2 + $0x20] sm:$0xff] %vm22, 0.0
    %28 = vst.msk [vmem:[#allocation2 + $0x28] sm:$0xff] %vm22, 0.0
    %29 = vst.msk [vmem:[#allocation2 + $0x30] sm:$0xff] %vm22, 0.0
    %30 = vst.msk [vmem:[#allocation2 + $0x38] sm:$0xff] %vm22, 0.0
    %31 = vst.msk [vmem:[#allocation2 + $0x40] sm:$0xff] %vm22, 0.0
    %32 = vst.msk [vmem:[#allocation2 + $0x48] sm:$0xff] %vm22, 0.0
    %33 = vst.msk [vmem:[#allocation2 + $0x50] sm:$0xff] %vm22, 0.0
    %34 = vst.msk [vmem:[#allocation2 + $0x58] sm:$0xff] %vm22, 0.0
    %35 = vst.msk [vmem:[#allocation2 + $0x60] sm:$0xff] %vm22, 0.0
    %36 = vst.msk [vmem:[#allocation2 + $0x68] sm:$0xff] %vm22, 0.0
    %37 = vst.msk [vmem:[#allocation2 + $0x70] sm:$0xff] %vm22, 0.0
    %38 = vst.msk [vmem:[#allocation2 + $0x78] sm:$0xff] %vm22, 0.0
  $region21: #{tpu_custom_call.1} parent=0 // pred_fallthru
    _
  %v39 = vld [vmem:[#allocation2] sm:$0xff]
  %v40 = vld [vmem:[#allocation2 + $0x8] sm:$0xff]
  %v41 = vld [vmem:[#allocation2 + $0x10] sm:$0xff]
  %v42 = vld [vmem:[#allocation2 + $0x18] sm:$0xff]
  %v43 = vld [vmem:[#allocation2 + $0x20] sm:$0xff]
  %v44 = vld [vmem:[#allocation2 + $0x28] sm:$0xff]
  %v45 = vld [vmem:[#allocation2 + $0x30] sm:$0xff]
  %v46 = vld [vmem:[#allocation2 + $0x38] sm:$0xff]
  %v47 = vld [vmem:[#allocation2 + $0x40] sm:$0xff]
  %v48 = vld [vmem:[#allocation2 + $0x48] sm:$0xff]
  %v49 = vld [vmem:[#allocation2 + $0x50] sm:$0xff]
  %v50 = vld [vmem:[#allocation2 + $0x58] sm:$0xff]
  %v51 = vld [vmem:[#allocation2 + $0x60] sm:$0xff]
  %v52 = vld [vmem:[#allocation2 + $0x68] sm:$0xff]
  %v53 = vld [vmem:[#allocation2 + $0x70] sm:$0xff]
  %v54 = vld [vmem:[#allocation2 + $0x78] sm:$0xff]
  %v55 = vld [vmem:[%s0] sm:$0xff]
  %v56 = vld [vmem:[%s0 + $0x8] sm:$0xff]
  %v57 = vld [vmem:[%s0 + $0x10] sm:$0xff]
  %v58 = vld [vmem:[%s0 + $0x18] sm:$0xff]
  %v59 = vld [vmem:[%s0 + $0x20] sm:$0xff]
  %v60 = vld [vmem:[%s0 + $0x28] sm:$0xff]
  %v61 = vld [vmem:[%s0 + $0x30] sm:$0xff]
  %v62 = vld [vmem:[%s0 + $0x38] sm:$0xff]
  %v63 = vld [vmem:[%s0 + $0x40] sm:$0xff]
  %v64 = vld [vmem:[%s0 + $0x48] sm:$0xff]
  %v65 = vld [vmem:[%s0 + $0x50] sm:$0xff]
  %v66 = vld [vmem:[%s0 + $0x58] sm:$0xff]
  %v67 = vld [vmem:[%s0 + $0x60] sm:$0xff]
  %v68 = vld [vmem:[%s0 + $0x68] sm:$0xff]
  %v69 = vld [vmem:[%s0 + $0x70] sm:$0xff]
  %v70 = vld [vmem:[%s0 + $0x78] sm:$0xff]
  %v71 = vld [vmem:[%s1] sm:$0xf]
  %v72 = vld [vmem:[%s1 + $0x4] sm:$0xf]
  %v73 = vld [vmem:[%s1 + $0x8] sm:$0xf]
  %v74 = vld [vmem:[%s1 + $0xc] sm:$0xf]
  %v75 = vld [vmem:[%s1 + $0x10] sm:$0xf]
  %v76 = vld [vmem:[%s1 + $0x14] sm:$0xf]
  %v77 = vld [vmem:[%s1 + $0x18] sm:$0xf]
  %v78 = vld [vmem:[%s1 + $0x1c] sm:$0xf]
  %v79 = vld [vmem:[%s1 + $0x20] sm:$0xf]
  %v80 = vld [vmem:[%s1 + $0x24] sm:$0xf]
  %v81 = vld [vmem:[%s1 + $0x28] sm:$0xf]
  %v82 = vld [vmem:[%s1 + $0x2c] sm:$0xf]
  %v83 = vld [vmem:[%s1 + $0x30] sm:$0xf]
  %v84 = vld [vmem:[%s1 + $0x34] sm:$0xf]
  %v85 = vld [vmem:[%s1 + $0x38] sm:$0xf]
  %v86 = vld [vmem:[%s1 + $0x3c] sm:$0xf]
  %v87 = vld [vmem:[%s1 + $0x40] sm:$0xf]
  %v88 = vld [vmem:[%s1 + $0x44] sm:$0xf]
  %v89 = vld [vmem:[%s1 + $0x48] sm:$0xf]
  %v90 = vld [vmem:[%s1 + $0x4c] sm:$0xf]
  %v91 = vld [vmem:[%s1 + $0x50] sm:$0xf]
  %v92 = vld [vmem:[%s1 + $0x54] sm:$0xf]
  %v93 = vld [vmem:[%s1 + $0x58] sm:$0xf]
  %v94 = vld [vmem:[%s1 + $0x5c] sm:$0xf]
  %v95 = vld [vmem:[%s1 + $0x60] sm:$0xf]
  %v96 = vld [vmem:[%s1 + $0x64] sm:$0xf]
  %v97 = vld [vmem:[%s1 + $0x68] sm:$0xf]
  %v98 = vld [vmem:[%s1 + $0x6c] sm:$0xf]
  %v99 = vld [vmem:[%s1 + $0x70] sm:$0xf]
  %v100 = vld [vmem:[%s1 + $0x74] sm:$0xf]
  %v101 = vld [vmem:[%s1 + $0x78] sm:$0xf]
  %v102 = vld [vmem:[%s1 + $0x7c] sm:$0xf]
  %v119 = vunpack.c.l.b16 %v55
  %v120 = vunpack.c.h.b16 %v55
  %v121 = vunpack.c.l.b16 %v56
  %v122 = vunpack.c.h.b16 %v56
  %v123 = vunpack.c.l.b16 %v57
  %v124 = vunpack.c.h.b16 %v57
  %v125 = vunpack.c.l.b16 %v58
  %v126 = vunpack.c.h.b16 %v58
  %v127 = vunpack.c.l.b16 %v59
  %v128 = vunpack.c.h.b16 %v59
  %v129 = vunpack.c.l.b16 %v60
  %v130 = vunpack.c.h.b16 %v60
  %v131 = vunpack.c.l.b16 %v61
  %v132 = vunpack.c.h.b16 %v61
  %v133 = vunpack.c.l.b16 %v62
  %v134 = vunpack.c.h.b16 %v62
  %v135 = vunpack.c.l.b16 %v63
  %v136 = vunpack.c.h.b16 %v63
  %v137 = vunpack.c.l.b16 %v64
  %v138 = vunpack.c.h.b16 %v64
  %v139 = vunpack.c.l.b16 %v65
  %v140 = vunpack.c.h.b16 %v65
  %v141 = vunpack.c.l.b16 %v66
  %v142 = vunpack.c.h.b16 %v66
  %v143 = vunpack.c.l.b16 %v67
  %v144 = vunpack.c.h.b16 %v67
  %v145 = vunpack.c.l.b16 %v68
  %v146 = vunpack.c.h.b16 %v68
  %v147 = vunpack.c.l.b16 %v69
  %v148 = vunpack.c.h.b16 %v69
  %v149 = vunpack.c.l.b16 %v70
  %v150 = vunpack.c.h.b16 %v70
  %v151 = vpack.c.b16 %v121, %v119
  %v152 = vpack.c.b16 %v122, %v120
  %v153 = vpack.c.b16 %v125, %v123
  %v154 = vpack.c.b16 %v126, %v124
  %v155 = vpack.c.b16 %v129, %v127
  %v156 = vpack.c.b16 %v130, %v128
  %v157 = vpack.c.b16 %v133, %v131
  %v158 = vpack.c.b16 %v134, %v132
  %v159 = vpack.c.b16 %v137, %v135
  %v160 = vpack.c.b16 %v138, %v136
  %v161 = vpack.c.b16 %v141, %v139
  %v162 = vpack.c.b16 %v142, %v140
  %v163 = vpack.c.b16 %v145, %v143
  %v164 = vpack.c.b16 %v146, %v144
  %v165 = vpack.c.b16 %v149, %v147
  %v166 = vpack.c.b16 %v150, %v148
  %v215 = vunpack.c.l.b16 %v71
  %v216 = vunpack.c.l.b16 %v72
  %v217 = vunpack.c.l.b16 %v73
  %v218 = vunpack.c.l.b16 %v74
  %v219 = vunpack.c.l.b16 %v75
  %v220 = vunpack.c.l.b16 %v76
  %v221 = vunpack.c.l.b16 %v77
  %v222 = vunpack.c.l.b16 %v78
  %v223 = vunpack.c.l.b16 %v79
  %v224 = vunpack.c.l.b16 %v80
  %v225 = vunpack.c.l.b16 %v81
  %v226 = vunpack.c.l.b16 %v82
  %v227 = vunpack.c.l.b16 %v83
  %v228 = vunpack.c.l.b16 %v84
  %v229 = vunpack.c.l.b16 %v85
  %v230 = vunpack.c.l.b16 %v86
  %v231 = vunpack.c.l.b16 %v87
  %v232 = vunpack.c.l.b16 %v88
  %v233 = vunpack.c.l.b16 %v89
  %v234 = vunpack.c.l.b16 %v90
  %v235 = vunpack.c.l.b16 %v91
  %v236 = vunpack.c.l.b16 %v92
  %v237 = vunpack.c.l.b16 %v93
  %v238 = vunpack.c.l.b16 %v94
  %v239 = vunpack.c.l.b16 %v95
  %v240 = vunpack.c.l.b16 %v96
  %v241 = vunpack.c.l.b16 %v97
  %v242 = vunpack.c.l.b16 %v98
  %v243 = vunpack.c.l.b16 %v99
  %v244 = vunpack.c.l.b16 %v100
  %v245 = vunpack.c.l.b16 %v101
  %v246 = vunpack.c.l.b16 %v102
  %v247 = vpack.c.b16 %v216, %v215
  %v248 = vpack.c.b16 %v218, %v217
  %v249 = vpack.c.b16 %v220, %v219
  %v250 = vpack.c.b16 %v222, %v221
  %v251 = vpack.c.b16 %v224, %v223
  %v252 = vpack.c.b16 %v226, %v225
  %v253 = vpack.c.b16 %v228, %v227
  %v254 = vpack.c.b16 %v230, %v229
  %v255 = vpack.c.b16 %v232, %v231
  %v256 = vpack.c.b16 %v234, %v233
  %v257 = vpack.c.b16 %v236, %v235
  %v258 = vpack.c.b16 %v238, %v237
  %v259 = vpack.c.b16 %v240, %v239
  %v260 = vpack.c.b16 %v242, %v241
  %v261 = vpack.c.b16 %v244, %v243
  %v262 = vpack.c.b16 %v246, %v245
  %279 = vmatprep.subr.bf16.mxu0 0
  %280 = vmatpush1.bf16.msra.mxu0 %v254
  %281 = vmatprep.subr.bf16.mxu0 0
  %282 = vmatpush1.bf16.msra.mxu0 %v253
  %283 = vmatprep.subr.bf16.mxu0 0
  %284 = vmatpush1.bf16.msra.mxu0 %v252
  %285 = vmatprep.subr.bf16.mxu0 0
  %286 = vmatpush1.bf16.msra.mxu0 %v251
  %287 = vmatprep.subr.bf16.mxu0 0
  %288 = vmatpush1.bf16.msra.mxu0 %v250
  %289 = vmatprep.subr.bf16.mxu0 0
  %290 = vmatpush1.bf16.msra.mxu0 %v249
  %291 = vmatprep.subr.bf16.mxu0 0
  %292 = vmatpush1.bf16.msra.mxu0 %v248
  %293 = vmatprep.subr.bf16.mxu0 0
  %294 = vmatpush1.bf16.msra.mxu0 %v247
  %295 = vmatprep.subr.bf16.mxu0 0
  %296 = vmatpush2.bf16.msra.mxu0 %v262
  %297 = vmatprep.subr.bf16.mxu0 0
  %298 = vmatpush2.bf16.msra.mxu0 %v261
  %299 = vmatprep.subr.bf16.mxu0 0
  %300 = vmatpush2.bf16.msra.mxu0 %v260
  %301 = vmatprep.subr.bf16.mxu0 0
  %302 = vmatpush2.bf16.msra.mxu0 %v259
  %303 = vmatprep.subr.bf16.mxu0 0
  %304 = vmatpush2.bf16.msra.mxu0 %v258
  %305 = vmatprep.subr.bf16.mxu0 0
  %306 = vmatpush2.bf16.msra.mxu0 %v257
  %307 = vmatprep.subr.bf16.mxu0 0
  %308 = vmatpush2.bf16.msra.mxu0 %v256
  %309 = vmatprep.subr.bf16.mxu0 0
  %310 = vmatpush2.bf16.msra.mxu0 %v255
  %311 = vmatprep.mubr.bf16.mxu0 %v152
  %312 = vmatmul.mubr.bf16.gmra.mxu0 %v151
  %v313 = vpop.f32.mrf.mxu0
  %v314 = vadd.f32 0.0, %v313
  %v315 = vpop.f32.mrf.mxu0
  %v316 = vpop.f32.mrf.mxu0
  %v317 = vadd.f32 0.0, %v316
  %v318 = vpop.f32.mrf.mxu0
  %319 = vmatprep.mubr.bf16.mxu0 %v154
  %320 = vmatmul.mubr.bf16.gmra.mxu0 %v153
  %v321 = vpop.f32.mrf.mxu0
  %v322 = vadd.f32 0.0, %v321
  %v323 = vpop.f32.mrf.mxu0
  %v324 = vpop.f32.mrf.mxu0
  %v325 = vadd.f32 0.0, %v324
  %v326 = vpop.f32.mrf.mxu0
  %327 = vmatprep.mubr.bf16.mxu0 %v156
  %328 = vmatmul.mubr.bf16.gmra.mxu0 %v155
  %v329 = vpop.f32.mrf.mxu0
  %v330 = vadd.f32 0.0, %v329
  %v331 = vpop.f32.mrf.mxu0
  %v332 = vpop.f32.mrf.mxu0
  %v333 = vadd.f32 0.0, %v332
  %v334 = vpop.f32.mrf.mxu0
  %335 = vmatprep.mubr.bf16.mxu0 %v158
  %336 = vmatmul.mubr.bf16.gmra.mxu0 %v157
  %v337 = vpop.f32.mrf.mxu0
  %v338 = vadd.f32 0.0, %v337
  %v339 = vpop.f32.mrf.mxu0
  %v340 = vpop.f32.mrf.mxu0
  %v341 = vadd.f32 0.0, %v340
  %v342 = vpop.f32.mrf.mxu0
  %343 = vmatprep.mubr.bf16.mxu0 %v160
  %344 = vmatmul.mubr.bf16.gmra.mxu0 %v159
  %v345 = vpop.f32.mrf.mxu0
  %v346 = vadd.f32 0.0, %v345
  %v347 = vpop.f32.mrf.mxu0
  %v348 = vpop.f32.mrf.mxu0
  %v349 = vadd.f32 0.0, %v348
  %v350 = vpop.f32.mrf.mxu0
  %351 = vmatprep.mubr.bf16.mxu0 %v162
  %352 = vmatmul.mubr.bf16.gmra.mxu0 %v161
  %v353 = vpop.f32.mrf.mxu0
  %v354 = vadd.f32 0.0, %v353
  %v355 = vpop.f32.mrf.mxu0
  %v356 = vpop.f32.mrf.mxu0
  %v357 = vadd.f32 0.0, %v356
  %v358 = vpop.f32.mrf.mxu0
  %359 = vmatprep.mubr.bf16.mxu0 %v164
  %360 = vmatmul.mubr.bf16.gmra.mxu0 %v163
  %v361 = vpop.f32.mrf.mxu0
  %v362 = vadd.f32 0.0, %v361
  %v363 = vpop.f32.mrf.mxu0
  %v364 = vpop.f32.mrf.mxu0
  %v365 = vadd.f32 0.0, %v364
  %v366 = vpop.f32.mrf.mxu0
  %367 = vmatprep.mubr.bf16.mxu0 %v166
  %368 = vmatmul.mubr.bf16.gmra.mxu0 %v165
  %v369 = vpop.f32.mrf.mxu0
  %v370 = vadd.f32 0.0, %v369
  %v371 = vpop.f32.mrf.mxu0
  %v372 = vpop.f32.mrf.mxu0
  %v373 = vadd.f32 0.0, %v372
  %v374 = vpop.f32.mrf.mxu0
  %375 = vdwg.mxu0
  %v376 = vadd.f32 %v39, %v314
  %v377 = vadd.f32 %v40, %v317
  %v378 = vadd.f32 %v41, %v322
  %v379 = vadd.f32 %v42, %v325
  %v380 = vadd.f32 %v43, %v330
  %v381 = vadd.f32 %v44, %v333
  %v382 = vadd.f32 %v45, %v338
  %v383 = vadd.f32 %v46, %v341
  %v384 = vadd.f32 %v47, %v346
  %v385 = vadd.f32 %v48, %v349
  %v386 = vadd.f32 %v49, %v354
  %v387 = vadd.f32 %v50, %v357
  %v388 = vadd.f32 %v51, %v362
  %v389 = vadd.f32 %v52, %v365
  %v390 = vadd.f32 %v53, %v370
  %v391 = vadd.f32 %v54, %v373
  %vm392 = vcmask 523264
  %393 = vst.msk [vmem:[#allocation2] sm:$0xff] %vm392, %v376
  %394 = vst.msk [vmem:[#allocation2 + $0x8] sm:$0xff] %vm392, %v377
  %395 = vst.msk [vmem:[#allocation2 + $0x10] sm:$0xff] %vm392, %v378
  %396 = vst.msk [vmem:[#allocation2 + $0x18] sm:$0xff] %vm392, %v379
  %397 = vst.msk [vmem:[#allocation2 + $0x20] sm:$0xff] %vm392, %v380
  %398 = vst.msk [vmem:[#allocation2 + $0x28] sm:$0xff] %vm392, %v381
  %399 = vst.msk [vmem:[#allocation2 + $0x30] sm:$0xff] %vm392, %v382
  %400 = vst.msk [vmem:[#allocation2 + $0x38] sm:$0xff] %vm392, %v383
  %401 = vst.msk [vmem:[#allocation2 + $0x40] sm:$0xff] %vm392, %v384
  %402 = vst.msk [vmem:[#allocation2 + $0x48] sm:$0xff] %vm392, %v385
  %403 = vst.msk [vmem:[#allocation2 + $0x50] sm:$0xff] %vm392, %v386
  %404 = vst.msk [vmem:[#allocation2 + $0x58] sm:$0xff] %vm392, %v387
  %405 = vst.msk [vmem:[#allocation2 + $0x60] sm:$0xff] %vm392, %v388
  %406 = vst.msk [vmem:[#allocation2 + $0x68] sm:$0xff] %vm392, %v389
  %407 = vst.msk [vmem:[#allocation2 + $0x70] sm:$0xff] %vm392, %v390
  %408 = vst.msk [vmem:[#allocation2 + $0x78] sm:$0xff] %vm392, %v391
  // Predicated region
  $region22: #{tpu_custom_call.1} parent=0 // pred_check
    %p409 = pneg %p18
  $region23: #{tpu_custom_call.1} parent=0 // pred_check_branch
    %411 = sbr.rel (%p409) target = $region25
  $region24: #{tpu_custom_call.1} parent=0 // pred_region
    %v412 = vld [vmem:[#allocation2] sm:$0xff]
    %v413 = vld [vmem:[#allocation2 + $0x8] sm:$0xff]
    %v414 = vld [vmem:[#allocation2 + $0x10] sm:$0xff]
    %v415 = vld [vmem:[#allocation2 + $0x18] sm:$0xff]
    %v416 = vld [vmem:[#allocation2 + $0x20] sm:$0xff]
    %v417 = vld [vmem:[#allocation2 + $0x28] sm:$0xff]
    %v418 = vld [vmem:[#allocation2 + $0x30] sm:$0xff]
    %v419 = vld [vmem:[#allocation2 + $0x38] sm:$0xff]
    %v420 = vld [vmem:[#allocation2 + $0x40] sm:$0xff]
    %v421 = vld [vmem:[#allocation2 + $0x48] sm:$0xff]
    %v422 = vld [vmem:[#allocation2 + $0x50] sm:$0xff]
    %v423 = vld [vmem:[#allocation2 + $0x58] sm:$0xff]
    %v424 = vld [vmem:[#allocation2 + $0x60] sm:$0xff]
    %v425 = vld [vmem:[#allocation2 + $0x68] sm:$0xff]
    %v426 = vld [vmem:[#allocation2 + $0x70] sm:$0xff]
    %v427 = vld [vmem:[#allocation2 + $0x78] sm:$0xff]
    %v428 = vld [vmem:[%s2] sm:$0x1]
    %v430 = vlaneseq
    %v431 = vshrl.u32 %v430, 7
    %v432 = vsub.s32 0, %v431
    %v433 = vrot.slane %v428, %v432
    %v435 = vmul.f32 %v412, %v433
    %v436 = vmul.f32 %v413, %v433
    %v437 = vmul.f32 %v414, %v433
    %v438 = vmul.f32 %v415, %v433
    %v439 = vmul.f32 %v416, %v433
    %v440 = vmul.f32 %v417, %v433
    %v441 = vmul.f32 %v418, %v433
    %v442 = vmul.f32 %v419, %v433
    %v443 = vmul.f32 %v420, %v433
    %v444 = vmul.f32 %v421, %v433
    %v445 = vmul.f32 %v422, %v433
    %v446 = vmul.f32 %v423, %v433
    %v447 = vmul.f32 %v424, %v433
    %v448 = vmul.f32 %v425, %v433
    %v449 = vmul.f32 %v426, %v433
    %v450 = vmul.f32 %v427, %v433
    %v451 = vld [vmem:[%s3] sm:$0x1]
    %v453 = vlaneseq
    %v454 = vshrl.u32 %v453, 7
    %v455 = vsub.s32 0, %v454
    %v456 = vrot.slane %v451, %v455
    %v458 = vadd.f32 %v435, %v456
    %v459 = vadd.f32 %v436, %v456
    %v460 = vadd.f32 %v437, %v456
    %v461 = vadd.f32 %v438, %v456
    %v462 = vadd.f32 %v439, %v456
    %v463 = vadd.f32 %v440, %v456
    %v464 = vadd.f32 %v441, %v456
    %v465 = vadd.f32 %v442, %v456
    %v466 = vadd.f32 %v443, %v456
    %v467 = vadd.f32 %v444, %v456
    %v468 = vadd.f32 %v445, %v456
    %v469 = vadd.f32 %v446, %v456
    %v470 = vadd.f32 %v447, %v456
    %v471 = vadd.f32 %v448, %v456
    %v472 = vadd.f32 %v449, %v456
    %v473 = vadd.f32 %v450, %v456
    %v474 = vmax.f32 %v458, 0.0
    %v475 = vmax.f32 %v459, 0.0
    %v476 = vmax.f32 %v460, 0.0
    %v477 = vmax.f32 %v461, 0.0
    %v478 = vmax.f32 %v462, 0.0
    %v479 = vmax.f32 %v463, 0.0
    %v480 = vmax.f32 %v464, 0.0
    %v481 = vmax.f32 %v465, 0.0
    %v482 = vmax.f32 %v466, 0.0
    %v483 = vmax.f32 %v467, 0.0
    %v484 = vmax.f32 %v468, 0.0
    %v485 = vmax.f32 %v469, 0.0
    %v486 = vmax.f32 %v470, 0.0
    %v487 = vmax.f32 %v471, 0.0
    %v488 = vmax.f32 %v472, 0.0
    %v489 = vmax.f32 %v473, 0.0
    %490 = vst.msk [vmem:[%s4] sm:$0xff] %vm392, %v474
    %491 = vst.msk [vmem:[%s4 + $0x8] sm:$0xff] %vm392, %v475
    %492 = vst.msk [vmem:[%s4 + $0x10] sm:$0xff] %vm392, %v476
    %493 = vst.msk [vmem:[%s4 + $0x18] sm:$0xff] %vm392, %v477
    %494 = vst.msk [vmem:[%s4 + $0x20] sm:$0xff] %vm392, %v478
    %495 = vst.msk [vmem:[%s4 + $0x28] sm:$0xff] %vm392, %v479
    %496 = vst.msk [vmem:[%s4 + $0x30] sm:$0xff] %vm392, %v480
    %497 = vst.msk [vmem:[%s4 + $0x38] sm:$0xff] %vm392, %v481
    %498 = vst.msk [vmem:[%s4 + $0x40] sm:$0xff] %vm392, %v482
    %499 = vst.msk [vmem:[%s4 + $0x48] sm:$0xff] %vm392, %v483
    %500 = vst.msk [vmem:[%s4 + $0x50] sm:$0xff] %vm392, %v484
    %501 = vst.msk [vmem:[%s4 + $0x58] sm:$0xff] %vm392, %v485
    %502 = vst.msk [vmem:[%s4 + $0x60] sm:$0xff] %vm392, %v486
    %503 = vst.msk [vmem:[%s4 + $0x68] sm:$0xff] %vm392, %v487
    %504 = vst.msk [vmem:[%s4 + $0x70] sm:$0xff] %vm392, %v488
    %505 = vst.msk [vmem:[%s4 + $0x78] sm:$0xff] %vm392, %v489
  $region25: #{tpu_custom_call.1} parent=0 // pred_fallthru
    _
  // Predicated region
  $region26: #{tpu_custom_call.1} parent=0 // pred_check
    _
  $region27: #{tpu_custom_call.1} parent=0 // pred_check_branch
    %507 = sbr.rel (0) target = $region29
  $region28: #{tpu_custom_call.1} parent=0 // pred_region
    _
  $region29: #{tpu_custom_call.1} parent=0 // pred_fallthru
    _
  // Predicated region
  $region30: #{tpu_custom_call.1} parent=0 // pred_check
    _
  $region31: #{tpu_custom_call.1} parent=0 // pred_check_branch
    %509 = sbr.rel (0) target = $region33
  $region32: #{tpu_custom_call.1} parent=0 // pred_region
    _
  $region33: #{tpu_custom_call.1} parent=0 // pred_fallthru
    _

</llo_original>
